<compile_context>
chip_gen: v7x
topology: tpu7x:2x2x1
jax: 0.10.0
libtpu: 0.0.40
codegen_flags: <defaults>
</compile_context>

<pallas_src>
import jax
import jax.numpy as jnp
from jax.experimental import pallas as pl
from jax.experimental.pallas import tpu as pltpu

EPS = 1e-08


def _awl_smem_kernel(params_ref, losses_ref, out_ref):
    # params_ref, losses_ref: (num,) f32 in SMEM; out_ref: (1,) f32 in SMEM.
    # num is tiny and static -> unrolled scalar-unit loop, no vector work.
    num = params_ref.shape[0]
    acc = jnp.float32(0.0)
    for i in range(num):
        p = params_ref[i]
        l = losses_ref[i]
        acc = acc + l / (p * p + jnp.float32(EPS))
    out_ref[0] = acc


def _awl_pallas(params: jax.Array, losses: jax.Array) -> jax.Array:
    """Forward pass. Requires f32 1-D inputs of identical shape (num,)."""
    assert params.ndim == 1 and params.shape == losses.shape, (
        params.shape,
        losses.shape,
    )
    assert params.dtype == jnp.float32 and losses.dtype == jnp.float32, (
        params.dtype,
        losses.dtype,
    )
    num = params.shape[0]
    out = pl.pallas_call(
        _awl_smem_kernel,
        out_shape=jax.ShapeDtypeStruct((1,), jnp.float32),
        in_specs=[
            pl.BlockSpec(memory_space=pltpu.SMEM),
            pl.BlockSpec(memory_space=pltpu.SMEM),
        ],
        out_specs=pl.BlockSpec(memory_space=pltpu.SMEM),
        cost_estimate=pl.CostEstimate(
            flops=3 * num,
            transcendentals=0,
            bytes_accessed=4 * (2 * num + 1),
        ),
    )(params, losses)
    # Free reshape to scalar; avoids a dynamic-slice HLO around the call.
    return out.reshape(())


@jax.custom_vjp
def automatic_weighted_loss(params: jax.Array, losses: jax.Array) -> jax.Array:
    """params: (num,) f32, losses: (num,) f32 -> scalar f32.

    Equivalent to AutomaticWeightedLoss.forward(*losses) for this module.
    """
    return _awl_pallas(params, losses)


def _awl_fwd(params, losses):
    return _awl_pallas(params, losses), (params, losses)


def _awl_bwd(residuals, g):
    params, losses = residuals
    denom = params * params + jnp.float32(EPS)
    d_params = g * (-2.0 * params * losses) / (denom * denom)
    d_losses = g / denom
    return d_params, d_losses


automatic_weighted_loss.defvjp(_awl_fwd, _awl_bwd)


if __name__ == "__main__":
    num = 2  # AutomaticWeightedLoss(num=2)

    # Deterministic parameter init: torch.ones(num) in the reference module.
    params = jnp.ones((num,), dtype=jnp.float32)

    # Deterministic example task losses (scalars), built in-script.
    key = jax.random.PRNGKey(0)
    losses = jax.random.uniform(
        key, (num,), dtype=jnp.float32, minval=0.5, maxval=2.0
    )

    result = automatic_weighted_loss(params, losses)
    result = jax.block_until_ready(result)

    # Reference check in plain JAX (same math as the PyTorch forward).
    ref = jnp.sum((1.0 / (params ** 2 + EPS)) * losses)
    assert jnp.allclose(result, ref, rtol=1e-6, atol=1e-6), (result, ref)

    # Gradient check for the learnable params (custom_vjp path).
    g_params = jax.grad(automatic_weighted_loss, argnums=0)(params, losses)
    g_params = jax.block_until_ready(g_params)
    g_ref = -2.0 * params * losses / (params ** 2 + EPS) ** 2
    assert jnp.allclose(g_params, g_ref, rtol=1e-6, atol=1e-6), (g_params, g_ref)

    print("KERNEL_OK")
</pallas_src>

<mosaic_0001>
module attributes {stable_mosaic.version = 11 : i64} {
  func.func @_awl_smem_kernel(%arg0: memref<2xf32, #tpu.memory_space<smem>>, %arg1: memref<2xf32, #tpu.memory_space<smem>>, %arg2: memref<1xf32, #tpu.memory_space<smem>>) attributes {dimension_semantics = [], scalar_prefetch = 0 : i64, scratch_operands = 0 : i64, tpu.core_type = #tpu.core_type<tc>} {
    %c0 = arith.constant 0 : index
    %0 = memref.load %arg0[%c0] : memref<2xf32, #tpu.memory_space<smem>>
    %c0_0 = arith.constant 0 : index
    %1 = memref.load %arg1[%c0_0] : memref<2xf32, #tpu.memory_space<smem>>
    %2 = arith.mulf %0, %0 : f32
    %cst = arith.constant 9.99999993E-9 : f32
    %3 = arith.addf %2, %cst : f32
    %4 = arith.divf %1, %3 : f32
    %cst_1 = arith.constant 0.000000e+00 : f32
    %5 = arith.addf %cst_1, %4 : f32
    %c1 = arith.constant 1 : index
    %6 = memref.load %arg0[%c1] : memref<2xf32, #tpu.memory_space<smem>>
    %c1_2 = arith.constant 1 : index
    %7 = memref.load %arg1[%c1_2] : memref<2xf32, #tpu.memory_space<smem>>
    %8 = arith.mulf %6, %6 : f32
    %cst_3 = arith.constant 9.99999993E-9 : f32
    %9 = arith.addf %8, %cst_3 : f32
    %10 = arith.divf %7, %9 : f32
    %11 = arith.addf %5, %10 : f32
    %c0_4 = arith.constant 0 : index
    %12 = memref.load %arg2[%c0_4] : memref<1xf32, #tpu.memory_space<smem>>
    memref.store %11, %arg2[%c0_4] : memref<1xf32, #tpu.memory_space<smem>>
    return
  }
}

</mosaic_0001>

<llo_original>
// kernel: tpu_custom_call.1
$region0: #{tpu_custom_call.1}
  #allocation0 [shape = 'u32[]', space=smem, size = 0x4, offset = 0x4, fixed_abs, tag = 'smem constant byte address 0x4 - core index']
  #allocation1 [shape = 'u32[144,128]{1,0:T(1,128)}', space=vmem, size = 0x12000, scoped, tag = 'internal scratch']
  %s0 = inlined_call_operand.hbm [shape: f32[2], index: 0, kind: input, shape index: {}]
  %s1 = inlined_call_operand.vmem [shape: f32[2], index: 1, kind: input, shape index: {}]
  %s2 = inlined_call_operand.hbm [shape: f32[1], index: 2, kind: output, shape index: {}]
  %s3 = sld [smem:[#allocation0]]
  $region26: #{tpu_custom_call.1} parent=0
    _
  %s5 = ssub.s32 1, %s3
  %s6 = scalar_select 0, %s5, %s3
  $region1: #{tpu_custom_call.1} parent=0
    #allocation2 [shape = 'u8[512]{0}', space=smem, size = 0x200, scoped, tag = 'input window, operand 0, single buffered']
    #allocation3 [shape = 's32[1]{0}', space=sflag, size = 0x4, scoped, tag = 'scoped memory for tpu_custom_call.1']
    #allocation4 [shape = 's32[1]{0}', space=sflag, size = 0x4, scoped, tag = 'scoped memory for tpu_custom_call.1']
    #allocation5 [shape = 's32[1]{0}', space=sflag, size = 0x4, scoped, tag = 'scoped memory for tpu_custom_call.1']
    #allocation6 [shape = 'u8[512]{0}', space=smem, size = 0x200, scoped, tag = 'input window, operand 1, single buffered']
    #allocation7 [shape = 'u8[512]{0}', space=smem, size = 0x200, scoped, tag = 'output window, operand 0, single buffered']
    %7 = vsyncpa [#allocation3], 0
    %8 = vsyncpa [#allocation5], 0
    %9 = vsyncpa [#allocation4], 0
    // Predicated region
    $region2: #{tpu_custom_call.1} parent=1 // pred_check
      _
    $region3: #{tpu_custom_call.1} parent=1 // pred_check_branch
      %11 = sbr.rel (0) target = $region5
    $region4: #{tpu_custom_call.1} parent=1 // pred_region
      %s13 = ssub.s32 16, 16
      %14 = vsyncadd [#allocation3], %s13
      %17 = dma.hbm_to_smem %s0, 16, [#allocation2], [#allocation3]
    $region5: #{tpu_custom_call.1} parent=1 // pred_fallthru
      _
    // Predicated region
    $region6: #{tpu_custom_call.1} parent=1 // pred_check
      _
    $region7: #{tpu_custom_call.1} parent=1 // pred_check_branch
      %19 = sbr.rel (0) target = $region9
    $region8: #{tpu_custom_call.1} parent=1 // pred_region
      %s21 = ssub.s32 16, 16
      %22 = vsyncadd [#allocation5], %s21
      %s24 = sshll.u32 %s1, 4
      %s25 = int_to_ptr.vmem [resolvable:$true] %s24
      %27 = dma.vmem_to_smem %s25, 16, [#allocation6], [#allocation5]
    $region9: #{tpu_custom_call.1} parent=1 // pred_fallthru
      _
    // Predicated region
    $region10: #{tpu_custom_call.1} parent=1 // pred_check
      _
    $region11: #{tpu_custom_call.1} parent=1 // pred_check_branch
      %29 = sbr.rel (0) target = $region13
    $region12: #{tpu_custom_call.1} parent=1 // pred_region
      %30 = dma.done [#allocation3], 16
    $region13: #{tpu_custom_call.1} parent=1 // pred_fallthru
      _
    // Predicated region
    $region14: #{tpu_custom_call.1} parent=1 // pred_check
      _
    $region15: #{tpu_custom_call.1} parent=1 // pred_check_branch
      %32 = sbr.rel (0) target = $region17
    $region16: #{tpu_custom_call.1} parent=1 // pred_region
      %33 = dma.done [#allocation5], 16
    $region17: #{tpu_custom_call.1} parent=1 // pred_fallthru
      _
    %34 = sfence
    %s35 = sld [smem:[#allocation2]]
    %s36 = sld [smem:[#allocation6]]
    %s37 = smul.f32 %s35, %s35
    %s38 = sadd.f32 %s37, 1e-08
    %v39 = vstv %s38
    %v40 = vrcp.pop %v39
    %s41 = vtos %v40
    %s42 = smul.f32 %s36, %s41
    %s43 = sadd.f32 %s42, 0.0
    %s44 = sld [smem:[#allocation2 + $0x1]]
    %s45 = sld [smem:[#allocation6 + $0x1]]
    %s46 = smul.f32 %s44, %s44
    %s47 = sadd.f32 %s46, 1e-08
    %v48 = vstv %s47
    %v49 = vrcp.pop %v48
    %s50 = vtos %v49
    %s51 = smul.f32 %s45, %s50
    %s52 = sadd.f32 %s43, %s51
    %s53 = scalar_lea.smem [#allocation7], 0
    %54 = sst [smem:[%s53]] %s52
    // Predicated region
    $region18: #{tpu_custom_call.1} parent=1 // pred_check
      _
    $region19: #{tpu_custom_call.1} parent=1 // pred_check_branch
      %56 = sbr.rel (0) target = $region21
    $region20: #{tpu_custom_call.1} parent=1 // pred_region
      %s58 = ssub.s32 16, 16
      %59 = vsyncadd [#allocation4], %s58
      %62 = dma.smem_to_hbm [#allocation7], 16, %s2, [#allocation4]
    $region21: #{tpu_custom_call.1} parent=1 // pred_fallthru
      _
    // Predicated region
    $region22: #{tpu_custom_call.1} parent=1 // pred_check
      _
    $region23: #{tpu_custom_call.1} parent=1 // pred_check_branch
      %64 = sbr.rel (0) target = $region25
    $region24: #{tpu_custom_call.1} parent=1 // pred_region
      %65 = dma.done [#allocation4], 16
    $region25: #{tpu_custom_call.1} parent=1 // pred_fallthru
      _
    %66 = sfence
    %67 = vsyncpa [#allocation3], 1
    %68 = vsyncpa [#allocation4], 1
    %69 = vsyncpa [#allocation5], 1

</llo_original>
